<compile_context>
chip_gen: v5e
topology: v5e:2x2
jax: 0.10.0
libtpu: 0.0.40
codegen_flags: <defaults>
</compile_context>

<pallas_src>
import functools
import math

import jax
import jax.numpy as jnp
from jax import lax
from jax.experimental import pallas as pl
from jax.experimental.pallas import tpu as pltpu


# float32 arccos approximation (Abramowitz & Stegun 4.4.46, |error| <= 2e-8 on [0, 1]).
_ACOS_COEFFS = (
    1.5707963050, -0.2145988016, 0.0889789874, -0.0501743046,
    0.0308918810, -0.0170881256, 0.0066700901, -0.0012624911,
)


def _acos(x):
    """arccos for x in (-1, 1), built only from VPU/EUP-friendly ops (mul/add/sqrt/select)."""
    ax = jnp.abs(x)
    poly = jnp.float32(_ACOS_COEFFS[-1])
    for c in _ACOS_COEFFS[-2::-1]:
        poly = poly * ax + jnp.float32(c)
    r = jnp.sqrt(1.0 - ax) * poly                       # = arccos(ax), ax in [0, 1]
    return jnp.where(x >= 0.0, r, jnp.float32(math.pi) - r)


# --------------------------- Fused SAM + masked-reduction kernel ---------------------------
def _fused_sam_kernel(pred_ref, targ_ref, mask_ref,
                      angle_sum_ref, rice_sum_ref, rice_area_ref,
                      *, eps, hw, ts):
    t = pl.program_id(1)

    # P3 accumulator pattern: the three (1, 128) lane-partial outputs are resident across
    # the HW-tile ("arbitrary") axis.
    @pl.when(t == 0)
    def _init():
        angle_sum_ref[...] = jnp.zeros_like(angle_sum_ref)
        rice_sum_ref[...] = jnp.zeros_like(rice_sum_ref)
        rice_area_ref[...] = jnp.zeros_like(rice_area_ref)

    # 2-D ragged-tail mask over the (TS, 128) pixel slab (covers both the 128-lane pad of
    # HW and a partial last grid block along the chunk axis).
    row = lax.broadcasted_iota(jnp.int32, (ts, 128), 0)
    lane = lax.broadcasted_iota(jnp.int32, (ts, 128), 1)
    valid = ((t * ts + row) * 128 + lane) < hw           # (TS, 128) bool

    # Upcast per-tile in-kernel; inputs stay in their native storage dtype in HBM.
    p = pred_ref[...].astype(jnp.float32)                # (C, TS, 128)
    q = targ_ref[...].astype(jnp.float32)                # (C, TS, 128)

    # Channel reduce over the leading dim = C-1 packed vreg adds (no cross-sublane XLU).
    dot = jnp.sum(p * q, axis=0)                         # (TS, 128)
    pn2 = jnp.sum(p * p, axis=0)                         # (TS, 128)
    qn2 = jnp.sum(q * q, axis=0)                         # (TS, 128)

    # rsqrt on the squared norms with per-norm eps^2 guard == dot / (max(|p|,eps)*max(|q|,eps)).
    eps2 = jnp.float32(eps) * jnp.float32(eps)
    inv = lax.rsqrt(jnp.maximum(pn2, eps2)) * lax.rsqrt(jnp.maximum(qn2, eps2))
    cos = jnp.clip(dot * inv, -1.0 + 1e-7, 1.0 - 1e-7)
    angle = _acos(cos)                                   # (TS, 128), radians

    # Single select at the angle level kills any garbage/NaN from padded tail lanes
    # (select, not multiply); the mask also needs a select so garbage bits cannot leak
    # into the area / rice sums.
    angle = jnp.where(valid, angle, 0.0)
    m = jnp.where(valid, mask_ref[...].astype(jnp.float32), 0.0)

    # Sublane-only reduces -> (1, 128) lane partials; final lane reduce in the wrapper.
    angle_sum_ref[...] += jnp.sum(angle, axis=0, keepdims=True)
    rice_sum_ref[...] += jnp.sum(angle * m, axis=0, keepdims=True)
    rice_area_ref[...] += jnp.sum(m, axis=0, keepdims=True)


# ----------------------------------------- Wrapper -----------------------------------------
def _round_up(x, m):
    return ((x + m - 1) // m) * m


def _choose_tile_sublanes(s_chunks, c, pred_itemsize, mask_itemsize,
                          budget_bytes=8 * 1024 * 1024):
    # Per grid step we DMA (2*C*pred_itemsize + mask_itemsize) bytes per 128-lane row,
    # double-buffered.  8 MiB of inputs keeps us comfortably inside the v5e 16 MiB scoped
    # default and v7x's 64 MiB physical VMEM even with the in-kernel f32 temporaries
    # (covered by vmem_limit_bytes below), while the 512-row cap (= 65536 lanes/step)
    # amortizes the ~0.35 us fixed per-step overhead to noise.
    bytes_per_row = (2 * c * pred_itemsize + mask_itemsize) * 128 * 2
    ts = max(8, int(budget_bytes // bytes_per_row) // 8 * 8)
    ts = min(ts, 512)
    if s_chunks <= ts:
        return s_chunks          # single tile: block dim == full array dim (any size OK)
    return ts                    # multiple of 8 sublanes


def adaptive_weighted_sam_loss(prediction, target, rice_mask,
                               unit_mode="rad", eps=1e-6, max_weight=10.0):
    B, C, H, W = prediction.shape
    HW = H * W
    S = _round_up(HW, 128) // 128                        # number of 128-lane pixel chunks

    def to_chunks(x, ch):
        x = x.reshape(B, ch, HW)
        pad = S * 128 - HW
        if pad:                                          # one-time pad only if HW % 128 != 0
            x = jnp.pad(x, ((0, 0), (0, 0), (0, pad)))
        return x.reshape(B, ch, S, 128)

    pred = to_chunks(prediction, C)                      # (B, C, S, 128), native dtype
    targ = to_chunks(target, C)
    mask = to_chunks(rice_mask, 1).reshape(B, S, 128)    # (B, S, 128)

    TS = _choose_tile_sublanes(S, C, prediction.dtype.itemsize, rice_mask.dtype.itemsize)
    nT = pl.cdiv(S, TS)

    kernel = functools.partial(_fused_sam_kernel, eps=eps, hw=HW, ts=TS)

    out_shape = tuple(jax.ShapeDtypeStruct((B, 1, 128), jnp.float32) for _ in range(3))
    out_specs = tuple(pl.BlockSpec((None, 1, 128), lambda b, t: (b, 0, 0)) for _ in range(3))

    # TODO(synk): on v7x with B == 1 the single "parallel" axis leaves one TensorCore idle;
    # a leading 2-way core split of the tile range would recover it (unnecessary for B >= 2,
    # no effect on v5e/v6e).
    angle_sum, rice_sum, rice_area = pl.pallas_call(
        kernel,
        out_shape=out_shape,
        grid=(B, nT),
        in_specs=[
            pl.BlockSpec((None, C, TS, 128), lambda b, t: (b, 0, t, 0)),
            pl.BlockSpec((None, C, TS, 128), lambda b, t: (b, 0, t, 0)),
            pl.BlockSpec((None, TS, 128), lambda b, t: (b, t, 0)),
        ],
        out_specs=out_specs,
        compiler_params=pltpu.CompilerParams(
            dimension_semantics=("parallel", "arbitrary"),
            vmem_limit_bytes=32 * 1024 * 1024),
    )(pred, targ, mask)

    # Final lane reduce of the (1, 128) partial sums; derive the non-rice quantities.
    angle_sum = angle_sum.reshape(B, 128).sum(axis=-1)
    rice_sum = rice_sum.reshape(B, 128).sum(axis=-1)
    rice_area = rice_area.reshape(B, 128).sum(axis=-1)
    nonrice_sum = angle_sum - rice_sum
    nonrice_area = jnp.float32(HW) - rice_area

    if unit_mode == "deg":                               # linear, so applied to the sums
        deg = jnp.float32(180.0 / math.pi)
        rice_sum = rice_sum * deg
        nonrice_sum = nonrice_sum * deg

    # --- adaptive weights (tiny scalar glue, mirrors calc_adaptive_weights) ---
    total_area = rice_area + nonrice_area
    lambda_rice = total_area / (rice_area + eps)
    lambda_nonrice = total_area / (nonrice_area + eps)
    lambda_rice = jnp.where(rice_area > eps, lambda_rice, 0.0)
    lambda_nonrice = jnp.where(nonrice_area > eps, lambda_nonrice, 0.0)
    lambda_rice = jnp.minimum(lambda_rice, max_weight)
    lambda_nonrice = jnp.minimum(lambda_nonrice, max_weight)
    weight_sum = lambda_rice + lambda_nonrice + eps
    lambda_rice = lambda_rice / weight_sum
    lambda_nonrice = lambda_nonrice / weight_sum

    rice_loss = rice_sum / HW          # == (angle * mask).mean(dim=[1,2,3])
    nonrice_loss = nonrice_sum / HW    # == (angle * (1-mask)).mean(dim=[1,2,3])
    total_loss = lambda_rice * rice_loss + lambda_nonrice * nonrice_loss
    return jnp.mean(total_loss)


# -------------------------------- pure-JAX reference ---------------------------------------
def reference_loss(prediction, target, rice_mask, unit_mode="rad", eps=1e-6, max_weight=10.0):
    B, C, H, W = prediction.shape
    pred_flat = prediction.reshape(B, C, -1).astype(jnp.float32)
    target_flat = target.reshape(B, C, -1).astype(jnp.float32)
    rm = rice_mask.astype(jnp.float32)
    rice_area = rm.sum(axis=(1, 2, 3))
    nonrice_area = (1.0 - rm).sum(axis=(1, 2, 3))
    total_area = rice_area + nonrice_area
    lr = total_area / (rice_area + eps)
    ln = total_area / (nonrice_area + eps)
    lr = jnp.where(rice_area > eps, lr, 0.0)
    ln = jnp.where(nonrice_area > eps, ln, 0.0)
    lr = jnp.minimum(lr, max_weight)
    ln = jnp.minimum(ln, max_weight)
    ws = lr + ln + eps
    lr, ln = lr / ws, ln / ws
    dot = (pred_flat * target_flat).sum(axis=1)
    pn = jnp.maximum(jnp.linalg.norm(pred_flat, axis=1), eps)
    tn = jnp.maximum(jnp.linalg.norm(target_flat, axis=1), eps)
    cos = jnp.clip(dot / (pn * tn), -1.0 + 1e-7, 1.0 - 1e-7)
    angle = jnp.arccos(cos)
    if unit_mode == "deg":
        angle = jnp.degrees(angle)
    angle = angle.reshape(B, 1, H, W)
    rice_loss = (angle * rm).mean(axis=(1, 2, 3))
    nonrice_loss = (angle * (1.0 - rm)).mean(axis=(1, 2, 3))
    return (lr * rice_loss + ln * nonrice_loss).mean()


if __name__ == "__main__":
    key = jax.random.PRNGKey(0)
    k1, k2, k3 = jax.random.split(key, 3)
    B, C, H, W = 2, 4, 16, 16
    prediction = jax.random.uniform(k1, (B, C, H, W), dtype=jnp.float32)
    target = jax.random.uniform(k2, (B, C, H, W), dtype=jnp.float32)
    rice_mask = (jax.random.uniform(k3, (B, 1, H, W)) > 0.5).astype(jnp.float32)

    loss = adaptive_weighted_sam_loss(prediction, target, rice_mask)
    loss = jax.block_until_ready(loss)

    ref = reference_loss(prediction, target, rice_mask)
    assert jnp.allclose(loss, ref, rtol=1e-4, atol=1e-5), (loss, ref)
    print("KERNEL_OK")
</pallas_src>

<mosaic_0001>
module attributes {stable_mosaic.version = 11 : i64} {
  func.func @_fused_sam_kernel(%arg0: i32, %arg1: i32, %arg2: memref<1x4x2x128xf32, #tpu.memory_space<vmem>>, %arg3: memref<1x4x2x128xf32, #tpu.memory_space<vmem>>, %arg4: memref<1x2x128xf32, #tpu.memory_space<vmem>>, %arg5: memref<1x1x128xf32, #tpu.memory_space<vmem>>, %arg6: memref<1x1x128xf32, #tpu.memory_space<vmem>>, %arg7: memref<1x1x128xf32, #tpu.memory_space<vmem>>) attributes {dimension_semantics = [#tpu.dimension_semantics<parallel>, #tpu.dimension_semantics<arbitrary>], iteration_bounds = array<i64: 2, 1>, scalar_prefetch = 0 : i64, scratch_operands = 0 : i64, tpu.core_type = #tpu.core_type<tc>, window_params = [{transform_indices = @transform_0, window_bounds = array<i64: 1, 4, 2, 128>}, {transform_indices = @transform_1, window_bounds = array<i64: 1, 4, 2, 128>}, {transform_indices = @transform_2, window_bounds = array<i64: 1, 2, 128>}, {transform_indices = @transform_3, window_bounds = array<i64: 1, 1, 128>}, {transform_indices = @transform_4, window_bounds = array<i64: 1, 1, 128>}, {transform_indices = @transform_5, window_bounds = array<i64: 1, 1, 128>}]} {
    %c0_i32 = arith.constant 0 : i32
    %0 = arith.cmpi eq, %arg1, %c0_i32 : i32
    %1 = arith.extui %0 : i1 to i32
    %c0_i32_0 = arith.constant 0 : i32
    %2 = arith.cmpi ne, %1, %c0_i32_0 : i32
    scf.if %2 {
      %cst_51 = arith.constant 0.000000e+00 : f32
      %99 = vector.broadcast %cst_51 : f32 to vector<1x128xf32>
      %c0_52 = arith.constant 0 : index
      %c0_53 = arith.constant 0 : index
      %c0_54 = arith.constant 0 : index
      %100 = vector.load %arg5[%c0_52, %c0_53, %c0_54] : memref<1x1x128xf32, #tpu.memory_space<vmem>>, vector<1x1x128xf32>
      %101 = vector.shape_cast %100 : vector<1x1x128xf32> to vector<1x128xf32>
      %102 = vector.shape_cast %99 : vector<1x128xf32> to vector<1x1x128xf32>
      tpu.vector_store %arg5[%c0_52, %c0_53, %c0_54], %102 {strides = array<i32>} : memref<1x1x128xf32, #tpu.memory_space<vmem>>, vector<1x1x128xf32>,
      %cst_55 = arith.constant 0.000000e+00 : f32
      %103 = vector.broadcast %cst_55 : f32 to vector<1x128xf32>
      %c0_56 = arith.constant 0 : index
      %c0_57 = arith.constant 0 : index
      %c0_58 = arith.constant 0 : index
      %104 = vector.load %arg6[%c0_56, %c0_57, %c0_58] : memref<1x1x128xf32, #tpu.memory_space<vmem>>, vector<1x1x128xf32>
      %105 = vector.shape_cast %104 : vector<1x1x128xf32> to vector<1x128xf32>
      %106 = vector.shape_cast %103 : vector<1x128xf32> to vector<1x1x128xf32>
      tpu.vector_store %arg6[%c0_56, %c0_57, %c0_58], %106 {strides = array<i32>} : memref<1x1x128xf32, #tpu.memory_space<vmem>>, vector<1x1x128xf32>,
      %cst_59 = arith.constant 0.000000e+00 : f32
      %107 = vector.broadcast %cst_59 : f32 to vector<1x128xf32>
      %c0_60 = arith.constant 0 : index
      %c0_61 = arith.constant 0 : index
      %c0_62 = arith.constant 0 : index
      %108 = vector.load %arg7[%c0_60, %c0_61, %c0_62] : memref<1x1x128xf32, #tpu.memory_space<vmem>>, vector<1x1x128xf32>
      %109 = vector.shape_cast %108 : vector<1x1x128xf32> to vector<1x128xf32>
      %110 = vector.shape_cast %107 : vector<1x128xf32> to vector<1x1x128xf32>
      tpu.vector_store %arg7[%c0_60, %c0_61, %c0_62], %110 {strides = array<i32>} : memref<1x1x128xf32, #tpu.memory_space<vmem>>, vector<1x1x128xf32>,
    } else {
    }
    %3 = tpu.iota {dimensions = array<i32: 0>} : vector<2x128xi32>
    %4 = tpu.iota {dimensions = array<i32: 1>} : vector<2x128xi32>
    %c2_i32 = arith.constant 2 : i32
    %5 = arith.muli %arg1, %c2_i32 : i32
    %6 = vector.broadcast %5 : i32 to vector<2x128xi32>
    %7 = arith.addi %6, %3 : vector<2x128xi32>
    %c128_i32 = arith.constant 128 : i32
    %8 = vector.broadcast %c128_i32 : i32 to vector<2x128xi32>
    %9 = arith.muli %7, %8 : vector<2x128xi32>
    %10 = arith.addi %9, %4 : vector<2x128xi32>
    %c256_i32 = arith.constant 256 : i32
    %11 = vector.broadcast %c256_i32 : i32 to vector<2x128xi32>
    %12 = arith.cmpi slt, %10, %11 : vector<2x128xi32>
    %c0 = arith.constant 0 : index
    %c0_1 = arith.constant 0 : index
    %c0_2 = arith.constant 0 : index
    %c0_3 = arith.constant 0 : index
    %13 = vector.load %arg2[%c0, %c0_1, %c0_2, %c0_3] : memref<1x4x2x128xf32, #tpu.memory_space<vmem>>, vector<1x4x2x128xf32>
    %14 = vector.shape_cast %13 : vector<1x4x2x128xf32> to vector<4x2x128xf32>
    %c0_4 = arith.constant 0 : index
    %c0_5 = arith.constant 0 : index
    %c0_6 = arith.constant 0 : index
    %c0_7 = arith.constant 0 : index
    %15 = vector.load %arg3[%c0_4, %c0_5, %c0_6, %c0_7] : memref<1x4x2x128xf32, #tpu.memory_space<vmem>>, vector<1x4x2x128xf32>
    %16 = vector.shape_cast %15 : vector<1x4x2x128xf32> to vector<4x2x128xf32>
    %17 = arith.mulf %14, %16 : vector<4x2x128xf32>
    %cst = arith.constant dense<0.000000e+00> : vector<2x128xf32>
    %18 = vector.multi_reduction <add>, %17, %cst [0] : vector<4x2x128xf32> to vector<2x128xf32>
    %19 = arith.mulf %14, %14 : vector<4x2x128xf32>
    %cst_8 = arith.constant dense<0.000000e+00> : vector<2x128xf32>
    %20 = vector.multi_reduction <add>, %19, %cst_8 [0] : vector<4x2x128xf32> to vector<2x128xf32>
    %21 = arith.mulf %16, %16 : vector<4x2x128xf32>
    %cst_9 = arith.constant dense<0.000000e+00> : vector<2x128xf32>
    %22 = vector.multi_reduction <add>, %21, %cst_9 [0] : vector<4x2x128xf32> to vector<2x128xf32>
    %cst_10 = arith.constant 9.99999997E-7 : f32
    %cst_11 = arith.constant 9.99999997E-7 : f32
    %23 = arith.mulf %cst_10, %cst_11 : f32
    %24 = vector.broadcast %23 : f32 to vector<2x128xf32>
    %25 = arith.maximumf %20, %24 : vector<2x128xf32>
    %26 = math.rsqrt %25 : vector<2x128xf32>
    %27 = vector.broadcast %23 : f32 to vector<2x128xf32>
    %28 = arith.maximumf %22, %27 : vector<2x128xf32>
    %29 = math.rsqrt %28 : vector<2x128xf32>
    %30 = arith.mulf %26, %29 : vector<2x128xf32>
    %31 = arith.mulf %18, %30 : vector<2x128xf32>
    %cst_12 = arith.constant -0.99999988 : f32
    %cst_13 = arith.constant 0.99999988 : f32
    %32 = vector.broadcast %cst_12 : f32 to vector<2x128xf32>
    %33 = arith.maximumf %32, %31 : vector<2x128xf32>
    %34 = vector.broadcast %cst_13 : f32 to vector<2x128xf32>
    %35 = arith.minimumf %34, %33 : vector<2x128xf32>
    %36 = math.absf %35 : vector<2x128xf32>
    %cst_14 = arith.constant -0.0012624911 : f32
    %37 = vector.broadcast %cst_14 : f32 to vector<2x128xf32>
    %38 = arith.mulf %37, %36 : vector<2x128xf32>
    %cst_15 = arith.constant 6.670090e-03 : f32
    %39 = vector.broadcast %cst_15 : f32 to vector<2x128xf32>
    %40 = arith.addf %38, %39 : vector<2x128xf32>
    %41 = arith.mulf %40, %36 : vector<2x128xf32>
    %cst_16 = arith.constant -0.0170881264 : f32
    %42 = vector.broadcast %cst_16 : f32 to vector<2x128xf32>
    %43 = arith.addf %41, %42 : vector<2x128xf32>
    %44 = arith.mulf %43, %36 : vector<2x128xf32>
    %cst_17 = arith.constant 0.0308918804 : f32
    %45 = vector.broadcast %cst_17 : f32 to vector<2x128xf32>
    %46 = arith.addf %44, %45 : vector<2x128xf32>
    %47 = arith.mulf %46, %36 : vector<2x128xf32>
    %cst_18 = arith.constant -0.0501743034 : f32
    %48 = vector.broadcast %cst_18 : f32 to vector<2x128xf32>
    %49 = arith.addf %47, %48 : vector<2x128xf32>
    %50 = arith.mulf %49, %36 : vector<2x128xf32>
    %cst_19 = arith.constant 0.0889789909 : f32
    %51 = vector.broadcast %cst_19 : f32 to vector<2x128xf32>
    %52 = arith.addf %50, %51 : vector<2x128xf32>
    %53 = arith.mulf %52, %36 : vector<2x128xf32>
    %cst_20 = arith.constant -0.214598805 : f32
    %54 = vector.broadcast %cst_20 : f32 to vector<2x128xf32>
    %55 = arith.addf %53, %54 : vector<2x128xf32>
    %56 = arith.mulf %55, %36 : vector<2x128xf32>
    %cst_21 = arith.constant 1.57079625 : f32
    %57 = vector.broadcast %cst_21 : f32 to vector<2x128xf32>
    %58 = arith.addf %56, %57 : vector<2x128xf32>
    %cst_22 = arith.constant 1.000000e+00 : f32
    %59 = vector.broadcast %cst_22 : f32 to vector<2x128xf32>
    %60 = arith.subf %59, %36 : vector<2x128xf32>
    %61 = math.sqrt %60 : vector<2x128xf32>
    %62 = arith.mulf %61, %58 : vector<2x128xf32>
    %cst_23 = arith.constant 0.000000e+00 : f32
    %63 = vector.broadcast %cst_23 : f32 to vector<2x128xf32>
    %64 = arith.cmpf oge, %35, %63 : vector<2x128xf32>
    %cst_24 = arith.constant 3.14159274 : f32
    %65 = vector.broadcast %cst_24 : f32 to vector<2x128xf32>
    %66 = arith.subf %65, %62 : vector<2x128xf32>
    %67 = arith.select %64, %62, %66 : vector<2x128xi1>, vector<2x128xf32>
    %cst_25 = arith.constant 0.000000e+00 : f32
    %68 = vector.broadcast %cst_25 : f32 to vector<2x128xf32>
    %69 = arith.select %12, %67, %68 : vector<2x128xi1>, vector<2x128xf32>
    %c0_26 = arith.constant 0 : index
    %c0_27 = arith.constant 0 : index
    %c0_28 = arith.constant 0 : index
    %70 = vector.load %arg4[%c0_26, %c0_27, %c0_28] : memref<1x2x128xf32, #tpu.memory_space<vmem>>, vector<1x2x128xf32>
    %71 = vector.shape_cast %70 : vector<1x2x128xf32> to vector<2x128xf32>
    %cst_29 = arith.constant 0.000000e+00 : f32
    %72 = vector.broadcast %cst_29 : f32 to vector<2x128xf32>
    %73 = arith.select %12, %71, %72 : vector<2x128xi1>, vector<2x128xf32>
    %c0_30 = arith.constant 0 : index
    %c0_31 = arith.constant 0 : index
    %c0_32 = arith.constant 0 : index
    %74 = vector.load %arg5[%c0_30, %c0_31, %c0_32] : memref<1x1x128xf32, #tpu.memory_space<vmem>>, vector<1x1x128xf32>
    %75 = vector.shape_cast %74 : vector<1x1x128xf32> to vector<1x128xf32>
    %cst_33 = arith.constant dense<0.000000e+00> : vector<128xf32>
    %76 = vector.multi_reduction <add>, %69, %cst_33 [0] : vector<2x128xf32> to vector<128xf32>
    %77 = vector.shape_cast %76 : vector<128xf32> to vector<1x128xf32>
    %78 = arith.addf %75, %77 : vector<1x128xf32>
    %c0_34 = arith.constant 0 : index
    %c0_35 = arith.constant 0 : index
    %c0_36 = arith.constant 0 : index
    %79 = vector.load %arg5[%c0_34, %c0_35, %c0_36] : memref<1x1x128xf32, #tpu.memory_space<vmem>>, vector<1x1x128xf32>
    %80 = vector.shape_cast %79 : vector<1x1x128xf32> to vector<1x128xf32>
    %81 = vector.shape_cast %78 : vector<1x128xf32> to vector<1x1x128xf32>
    tpu.vector_store %arg5[%c0_34, %c0_35, %c0_36], %81 {strides = array<i32>} : memref<1x1x128xf32, #tpu.memory_space<vmem>>, vector<1x1x128xf32>,
    %c0_37 = arith.constant 0 : index
    %c0_38 = arith.constant 0 : index
    %c0_39 = arith.constant 0 : index
    %82 = vector.load %arg6[%c0_37, %c0_38, %c0_39] : memref<1x1x128xf32, #tpu.memory_space<vmem>>, vector<1x1x128xf32>
    %83 = vector.shape_cast %82 : vector<1x1x128xf32> to vector<1x128xf32>
    %84 = arith.mulf %69, %73 : vector<2x128xf32>
    %cst_40 = arith.constant dense<0.000000e+00> : vector<128xf32>
    %85 = vector.multi_reduction <add>, %84, %cst_40 [0] : vector<2x128xf32> to vector<128xf32>
    %86 = vector.shape_cast %85 : vector<128xf32> to vector<1x128xf32>
    %87 = arith.addf %83, %86 : vector<1x128xf32>
    %c0_41 = arith.constant 0 : index
    %c0_42 = arith.constant 0 : index
    %c0_43 = arith.constant 0 : index
    %88 = vector.load %arg6[%c0_41, %c0_42, %c0_43] : memref<1x1x128xf32, #tpu.memory_space<vmem>>, vector<1x1x128xf32>
    %89 = vector.shape_cast %88 : vector<1x1x128xf32> to vector<1x128xf32>
    %90 = vector.shape_cast %87 : vector<1x128xf32> to vector<1x1x128xf32>
    tpu.vector_store %arg6[%c0_41, %c0_42, %c0_43], %90 {strides = array<i32>} : memref<1x1x128xf32, #tpu.memory_space<vmem>>, vector<1x1x128xf32>,
    %c0_44 = arith.constant 0 : index
    %c0_45 = arith.constant 0 : index
    %c0_46 = arith.constant 0 : index
    %91 = vector.load %arg7[%c0_44, %c0_45, %c0_46] : memref<1x1x128xf32, #tpu.memory_space<vmem>>, vector<1x1x128xf32>
    %92 = vector.shape_cast %91 : vector<1x1x128xf32> to vector<1x128xf32>
    %cst_47 = arith.constant dense<0.000000e+00> : vector<128xf32>
    %93 = vector.multi_reduction <add>, %73, %cst_47 [0] : vector<2x128xf32> to vector<128xf32>
    %94 = vector.shape_cast %93 : vector<128xf32> to vector<1x128xf32>
    %95 = arith.addf %92, %94 : vector<1x128xf32>
    %c0_48 = arith.constant 0 : index
    %c0_49 = arith.constant 0 : index
    %c0_50 = arith.constant 0 : index
    %96 = vector.load %arg7[%c0_48, %c0_49, %c0_50] : memref<1x1x128xf32, #tpu.memory_space<vmem>>, vector<1x1x128xf32>
    %97 = vector.shape_cast %96 : vector<1x1x128xf32> to vector<1x128xf32>
    %98 = vector.shape_cast %95 : vector<1x128xf32> to vector<1x1x128xf32>
    tpu.vector_store %arg7[%c0_48, %c0_49, %c0_50], %98 {strides = array<i32>} : memref<1x1x128xf32, #tpu.memory_space<vmem>>, vector<1x1x128xf32>,
    return
  }
  func.func @transform_0(%arg0: i32, %arg1: i32) -> (i32, i32, i32, i32) {
    %c0_i32 = arith.constant 0 : i32
    %c0_i32_0 = arith.constant 0 : i32
    %c0_i32_1 = arith.constant 0 : i32
    return %arg0, %c0_i32, %arg1, %c0_i32_0 : i32, i32, i32, i32
  }
  func.func @transform_1(%arg0: i32, %arg1: i32) -> (i32, i32, i32, i32) {
    %c0_i32 = arith.constant 0 : i32
    %c0_i32_0 = arith.constant 0 : i32
    %c0_i32_1 = arith.constant 0 : i32
    return %arg0, %c0_i32, %arg1, %c0_i32_0 : i32, i32, i32, i32
  }
  func.func @transform_2(%arg0: i32, %arg1: i32) -> (i32, i32, i32) {
    %c0_i32 = arith.constant 0 : i32
    %c0_i32_0 = arith.constant 0 : i32
    return %arg0, %arg1, %c0_i32 : i32, i32, i32
  }
  func.func @transform_3(%arg0: i32, %arg1: i32) -> (i32, i32, i32) {
    %c0_i32 = arith.constant 0 : i32
    %c0_i32_0 = arith.constant 0 : i32
    %c0_i32_1 = arith.constant 0 : i32
    return %arg0, %c0_i32, %c0_i32_0 : i32, i32, i32
  }
  func.func @transform_4(%arg0: i32, %arg1: i32) -> (i32, i32, i32) {
    %c0_i32 = arith.constant 0 : i32
    %c0_i32_0 = arith.constant 0 : i32
    %c0_i32_1 = arith.constant 0 : i32
    return %arg0, %c0_i32, %c0_i32_0 : i32, i32, i32
  }
  func.func @transform_5(%arg0: i32, %arg1: i32) -> (i32, i32, i32) {
    %c0_i32 = arith.constant 0 : i32
    %c0_i32_0 = arith.constant 0 : i32
    %c0_i32_1 = arith.constant 0 : i32
    return %arg0, %c0_i32, %c0_i32_0 : i32, i32, i32
  }
}

</mosaic_0001>

<llo_original>
// kernel: tpu_custom_call.1
$region0: #{tpu_custom_call.1}
  #allocation0 [shape = 'u32[]', space=smem, size = 0x4, offset = 0x4, fixed_abs, tag = 'smem constant byte address 0x4 - core index']
  #allocation1 [shape = 'u32[72,128]{1,0:T(1,128)}', space=vmem, size = 0x9000, scoped, tag = 'internal scratch']
  %s0 = inlined_call_operand.hbm [shape: f32[2,4,2,128], index: 0, kind: input, shape index: {}]
  %s1 = inlined_call_operand.hbm [shape: f32[2,4,2,128], index: 1, kind: input, shape index: {}]
  %s2 = inlined_call_operand.hbm [shape: f32[2,2,128], index: 2, kind: input, shape index: {}]
  %s3 = inlined_call_operand.hbm [shape: f32[2,1,128], index: 3, kind: output, shape index: {0}]
  %s4 = inlined_call_operand.hbm [shape: f32[2,1,128], index: 4, kind: output, shape index: {1}]
  %s5 = inlined_call_operand.hbm [shape: f32[2,1,128], index: 5, kind: output, shape index: {2}]
  %6 = xla_tuple %s3, %s4, %s5
  %s7 = sld [smem:[#allocation0]]
  $region77: #{tpu_custom_call.1} parent=0
    _
  %s9 = ssub.s32 1, %s7
  %s10 = scalar_select 0, %s9, %s7
  $region1: #{tpu_custom_call.1} parent=0
    #allocation2 [shape = 'u8[8192]{0}', space=vmem, size = 0x2000, scoped, tag = 'input window, operand 0']
    #allocation3 [shape = 's32[2]{0}', space=sflag, size = 0x8, scoped, tag = 'scoped memory for tpu_custom_call.1']
    #allocation4 [shape = 's32[2]{0}', space=sflag, size = 0x8, scoped, tag = 'scoped memory for tpu_custom_call.1']
    #allocation5 [shape = 'u8[8192]{0}', space=vmem, size = 0x2000, scoped, tag = 'input window, operand 1']
    #allocation6 [shape = 's32[2]{0}', space=sflag, size = 0x8, scoped, tag = 'scoped memory for tpu_custom_call.1']
    #allocation7 [shape = 'u8[2048]{0}', space=vmem, size = 0x800, scoped, tag = 'input window, operand 2']
    #allocation8 [shape = 'u8[1024]{0}', space=vmem, size = 0x400, scoped, tag = 'output window, operand 0']
    #allocation9 [shape = 'u8[1024]{0}', space=vmem, size = 0x400, scoped, tag = 'output window, operand 1']
    #allocation10 [shape = 's32[2]{0}', space=sflag, size = 0x8, scoped, tag = 'scoped memory for tpu_custom_call.1']
    #allocation11 [shape = 'u8[1024]{0}', space=vmem, size = 0x400, scoped, tag = 'output window, operand 2']
    %11 = vsyncpa [#allocation3], 0
    %s12 = scalar_lea.sflag [#allocation3], 1
    %13 = vsyncpa %s12, 0
    %14 = vsyncpa [#allocation6], 0
    %s15 = scalar_lea.sflag [#allocation6], 1
    %16 = vsyncpa %s15, 0
    %17 = vsyncpa [#allocation4], 0
    %s18 = scalar_lea.sflag [#allocation4], 1
    %19 = vsyncpa %s18, 0
    %20 = vsyncpa [#allocation10], 0
    %s21 = scalar_lea.sflag [#allocation10], 1
    %22 = vsyncpa %s21, 0
    loop: start=0, step=1, limit=4
    $region2: #{tpu_custom_call.1} parent=1 // loop_pre_header
      _
    $region3: #{tpu_custom_call.1} parent=1 // loop_header
      %s24 = sphi 0, %s28
      %p25 = scmp.ge.s32.totalorder %s24, 4
      %s31 = sphi 0, %s43
      %s32 = sphi 0, %s39
      %s33 = sphi 0, %s31
      %s34 = sphi 0, %s32
      %s35 = sphi 0, %s33
      %s36 = sphi 0, %s34
      %s48 = sphi 0, %s50
      %s51 = sphi 0, %s48
      %s52 = sphi 0, %s51
      %s68 = sphi 0, %s52
      %s76 = sphi 0, %s78
      %s79 = sphi 0, %s76
      %s80 = sphi 0, %s79
      %s96 = sphi 0, %s80
      %s104 = sphi 0, %s106
      %s107 = sphi 0, %s104
      %s108 = sphi 0, %s107
      %s124 = sphi 0, %s108
      %s130 = sphi 0, %s132
      %s133 = sphi 0, %s130
      %s134 = sphi 0, %s133
      %s150 = sphi 0, %s134
      %s156 = sphi 0, %s158
      %s159 = sphi 0, %s156
      %s160 = sphi 0, %s159
      %s176 = sphi 0, %s160
      %s182 = sphi 0, %s184
      %s185 = sphi 0, %s182
      %s186 = sphi 0, %s185
      %s202 = sphi 0, %s186
    $region4: #{tpu_custom_call.1} parent=1 // loop_header_branch
      %27 = sbr.rel (%p25) target = $region8
    $region5: #{tpu_custom_call.1} parent=1 // loop_body
      %s29 = ssub.s32 %s24, 1
      %s30 = ssub.s32 %s24, 2
      %s37 = sadd.s32 1, %s32
      %p38 = scmp.ge.s32.totalorder %s37, 1
      %s39 = scalar_select %p38, 0, %s37
      %s40 = sadd.s32 1, %s31
      %s41 = scalar_select %p38, %s40, %s31
      %p42 = scmp.ge.s32.totalorder %s41, 2
      %s43 = scalar_select %p42, 0, %s41
      %s44 = ssub.s32 %s31, %s43
      %s45 = ssub.s32 %s32, %s39
      %s46 = sor.u32 %s44, %s45
      %p47 = scmp.eq.s32.totalorder %s46, 0
      %s49 = sadd.s32 %s48, 1
      %s50 = scalar_select %p47, %s48, %s49
      %p53 = pneg %p47
      %p54 = scmp.eq.s32.totalorder %s24, 1
      %p55 = por %p53, %p54
      %p56 = scmp.ne.s32.totalorder %s48, %s51
      %p57 = scmp.eq.s32.totalorder %s24, 0
      %p58 = por %p56, %p57
      %p59 = scmp.ne.s32.totalorder %s48, %s51
      %p60 = scmp.eq.s32.totalorder %s29, 1
      %p61 = por %p59, %p60
      %p62 = scmp.ne.s32.totalorder %s51, %s52
      %p63 = scmp.eq.s32.totalorder %s29, 0
      %p64 = por %p62, %p63
      %p65 = scmp.ne.s32.totalorder %s51, %s52
      %p66 = scmp.eq.s32.totalorder %s30, 1
      %p67 = por %p65, %p66
      %p69 = scmp.ne.s32.totalorder %s52, %s68
      %p70 = scmp.eq.s32.totalorder %s30, 0
      %p71 = por %p69, %p70
      %s72 = ssub.s32 %s31, %s43
      %s73 = ssub.s32 %s32, %s39
      %s74 = sor.u32 %s72, %s73
      %p75 = scmp.eq.s32.totalorder %s74, 0
      %s77 = sadd.s32 %s76, 1
      %s78 = scalar_select %p75, %s76, %s77
      %p81 = pneg %p75
      %p82 = scmp.eq.s32.totalorder %s24, 1
      %p83 = por %p81, %p82
      %p84 = scmp.ne.s32.totalorder %s76, %s79
      %p85 = scmp.eq.s32.totalorder %s24, 0
      %p86 = por %p84, %p85
      %p87 = scmp.ne.s32.totalorder %s76, %s79
      %p88 = scmp.eq.s32.totalorder %s29, 1
      %p89 = por %p87, %p88
      %p90 = scmp.ne.s32.totalorder %s79, %s80
      %p91 = scmp.eq.s32.totalorder %s29, 0
      %p92 = por %p90, %p91
      %p93 = scmp.ne.s32.totalorder %s79, %s80
      %p94 = scmp.eq.s32.totalorder %s30, 1
      %p95 = por %p93, %p94
      %p97 = scmp.ne.s32.totalorder %s80, %s96
      %p98 = scmp.eq.s32.totalorder %s30, 0
      %p99 = por %p97, %p98
      %s100 = ssub.s32 %s31, %s43
      %s101 = ssub.s32 %s32, %s39
      %s102 = sor.u32 %s100, %s101
      %p103 = scmp.eq.s32.totalorder %s102, 0
      %s105 = sadd.s32 %s104, 1
      %s106 = scalar_select %p103, %s104, %s105
      %p109 = pneg %p103
      %p110 = scmp.eq.s32.totalorder %s24, 1
      %p111 = por %p109, %p110
      %p112 = scmp.ne.s32.totalorder %s104, %s107
      %p113 = scmp.eq.s32.totalorder %s24, 0
      %p114 = por %p112, %p113
      %p115 = scmp.ne.s32.totalorder %s104, %s107
      %p116 = scmp.eq.s32.totalorder %s29, 1
      %p117 = por %p115, %p116
      %p118 = scmp.ne.s32.totalorder %s107, %s108
      %p119 = scmp.eq.s32.totalorder %s29, 0
      %p120 = por %p118, %p119
      %p121 = scmp.ne.s32.totalorder %s107, %s108
      %p122 = scmp.eq.s32.totalorder %s30, 1
      %p123 = por %p121, %p122
      %p125 = scmp.ne.s32.totalorder %s108, %s124
      %p126 = scmp.eq.s32.totalorder %s30, 0
      %p127 = por %p125, %p126
      %s128 = ssub.s32 %s31, %s43
      %p129 = scmp.eq.s32.totalorder %s128, 0
      %s131 = sadd.s32 %s130, 1
      %s132 = scalar_select %p129, %s130, %s131
      %p135 = pneg %p129
      %p136 = scmp.eq.s32.totalorder %s24, 1
      %p137 = por %p135, %p136
      %p138 = scmp.ne.s32.totalorder %s130, %s133
      %p139 = scmp.eq.s32.totalorder %s24, 0
      %p140 = por %p138, %p139
      %p141 = scmp.ne.s32.totalorder %s130, %s133
      %p142 = scmp.eq.s32.totalorder %s29, 1
      %p143 = por %p141, %p142
      %p144 = scmp.ne.s32.totalorder %s133, %s134
      %p145 = scmp.eq.s32.totalorder %s29, 0
      %p146 = por %p144, %p145
      %p147 = scmp.ne.s32.totalorder %s133, %s134
      %p148 = scmp.eq.s32.totalorder %s30, 1
      %p149 = por %p147, %p148
      %p151 = scmp.ne.s32.totalorder %s134, %s150
      %p152 = scmp.eq.s32.totalorder %s30, 0
      %p153 = por %p151, %p152
      %s154 = ssub.s32 %s31, %s43
      %p155 = scmp.eq.s32.totalorder %s154, 0
      %s157 = sadd.s32 %s156, 1
      %s158 = scalar_select %p155, %s156, %s157
      %p161 = pneg %p155
      %p162 = scmp.eq.s32.totalorder %s24, 1
      %p163 = por %p161, %p162
      %p164 = scmp.ne.s32.totalorder %s156, %s159
      %p165 = scmp.eq.s32.totalorder %s24, 0
      %p166 = por %p164, %p165
      %p167 = scmp.ne.s32.totalorder %s156, %s159
      %p168 = scmp.eq.s32.totalorder %s29, 1
      %p169 = por %p167, %p168
      %p170 = scmp.ne.s32.totalorder %s159, %s160
      %p171 = scmp.eq.s32.totalorder %s29, 0
      %p172 = por %p170, %p171
      %p173 = scmp.ne.s32.totalorder %s159, %s160
      %p174 = scmp.eq.s32.totalorder %s30, 1
      %p175 = por %p173, %p174
      %p177 = scmp.ne.s32.totalorder %s160, %s176
      %p178 = scmp.eq.s32.totalorder %s30, 0
      %p179 = por %p177, %p178
      %s180 = ssub.s32 %s31, %s43
      %p181 = scmp.eq.s32.totalorder %s180, 0
      %s183 = sadd.s32 %s182, 1
      %s184 = scalar_select %p181, %s182, %s183
      %p187 = pneg %p181
      %p188 = scmp.eq.s32.totalorder %s24, 1
      %p189 = por %p187, %p188
      %p190 = scmp.ne.s32.totalorder %s182, %s185
      %p191 = scmp.eq.s32.totalorder %s24, 0
      %p192 = por %p190, %p191
      %p193 = scmp.ne.s32.totalorder %s182, %s185
      %p194 = scmp.eq.s32.totalorder %s29, 1
      %p195 = por %p193, %p194
      %p196 = scmp.ne.s32.totalorder %s185, %s186
      %p197 = scmp.eq.s32.totalorder %s29, 0
      %p198 = por %p196, %p197
      %p199 = scmp.ne.s32.totalorder %s185, %s186
      %p200 = scmp.eq.s32.totalorder %s30, 1
      %p201 = por %p199, %p200
      %p203 = scmp.ne.s32.totalorder %s186, %s202
      %p204 = scmp.eq.s32.totalorder %s30, 0
      %p205 = por %p203, %p204
      %p206 = scmp.le.s32.totalorder 1, %s24
      %p207 = scmp.lt.s32.totalorder %s24, 3
      %p208 = pnand %p206, %p207
      %p209 = pneg %p208
      // Predicated region
      $region9: #{tpu_custom_call.1} parent=5 // pred_check
        _
      $region10: #{tpu_custom_call.1} parent=5 // pred_check_branch
        %211 = sbr.rel (%p208) target = $region12
      $region11: #{tpu_custom_call.1} parent=5 // pred_region
        %s212 = ssub.s32 %s24, 1
      $region12: #{tpu_custom_call.1} parent=5 // pred_fallthru
        _
      %p213 = scmp.lt.s32.totalorder %s24, 2
      // Predicated region
      $region13: #{tpu_custom_call.1} parent=5 // pred_check
        %p214 = pneg %p213
      $region14: #{tpu_custom_call.1} parent=5 // pred_check_branch
        %216 = sbr.rel (%p214) target = $region16
      $region15: #{tpu_custom_call.1} parent=5 // pred_region
        // Predicated region
        $region17: #{tpu_custom_call.1} parent=15 // pred_check
          %p217 = pneg %p58
        $region18: #{tpu_custom_call.1} parent=15 // pred_check_branch
          %219 = sbr.rel (%p217) target = $region20
        $region19: #{tpu_custom_call.1} parent=15 // pred_region
          %s220 = sand.u32 %s48, 1
          %s221 = scalar_lea.sflag [#allocation3], %s220
          %s222 = sand.u32 %s48, 1
          %s223 = smul.addr %s222, 8
          %s224 = scalar_lea.vmem [#allocation2], %s223
          %226 = vsyncadd %s221, 0
          %s227 = smul.addr %s31, 4
          %s228 = sadd.s32 %s32, %s227
          %s229 = smul.addr %s228, 2
          %s230 = scalar_lea.hbm %s0, %s229
          %s231 = sshll.u32 %s230, 4
          %s232 = int_to_ptr.hbm [resolvable:$true] %s231
          %s233 = sshll.u32 %s224, 4
          %s234 = int_to_ptr.vmem [resolvable:$true] %s233
          %239 = dma.hbm_to_vmem [thread:$0]  %s232, 128, %s234, %s221, 32, 32, 2
        $region20: #{tpu_custom_call.1} parent=15 // pred_fallthru
          _
        // Predicated region
        $region21: #{tpu_custom_call.1} parent=15 // pred_check
          %p240 = pneg %p86
        $region22: #{tpu_custom_call.1} parent=15 // pred_check_branch
          %242 = sbr.rel (%p240) target = $region24
        $region23: #{tpu_custom_call.1} parent=15 // pred_region
          %s243 = sand.u32 %s24, 1
          %s244 = scalar_lea.sflag [#allocation6], %s243
          %s245 = sand.u32 %s76, 1
          %s246 = smul.addr %s245, 8
          %s247 = scalar_lea.vmem [#allocation5], %s246
          %249 = vsyncadd %s244, 0
          %s250 = smul.addr %s31, 4
          %s251 = sadd.s32 %s32, %s250
          %s252 = smul.addr %s251, 2
          %s253 = scalar_lea.hbm %s1, %s252
          %s254 = sshll.u32 %s253, 4
          %s255 = int_to_ptr.hbm [resolvable:$true] %s254
          %s256 = sshll.u32 %s247, 4
          %s257 = int_to_ptr.vmem [resolvable:$true] %s256
          %262 = dma.hbm_to_vmem [thread:$0]  %s255, 128, %s257, %s244, 32, 32, 2
        $region24: #{tpu_custom_call.1} parent=15 // pred_fallthru
          _
        // Predicated region
        $region25: #{tpu_custom_call.1} parent=15 // pred_check
          %p263 = pneg %p114
        $region26: #{tpu_custom_call.1} parent=15 // pred_check_branch
          %265 = sbr.rel (%p263) target = $region28
        $region27: #{tpu_custom_call.1} parent=15 // pred_region
          %s266 = sand.u32 %s24, 1
          %s267 = scalar_lea.sflag [#allocation6], %s266
          %s268 = sand.u32 %s104, 1
          %s269 = smul.addr %s268, 2
          %s270 = scalar_lea.vmem [#allocation7], %s269
          %272 = vsyncadd %s267, 0
          %s273 = sadd.s32 %s32, %s31
          %s274 = smul.addr %s273, 2
          %s275 = scalar_lea.hbm %s2, %s274
          %s277 = sshll.u32 %s275, 4
          %s278 = int_to_ptr.hbm [resolvable:$true] %s277
          %s279 = sshll.u32 %s270, 4
          %s280 = int_to_ptr.vmem [resolvable:$true] %s279
          %282 = dma.hbm_to_vmem [thread:$0]  %s278, 32, %s280, %s267
        $region28: #{tpu_custom_call.1} parent=15 // pred_fallthru
          _
      $region16: #{tpu_custom_call.1} parent=5 // pred_fallthru
        _
      %p283 = scmp.le.s32.totalorder 1, %s24
      %p284 = scmp.lt.s32.totalorder %s24, 3
      %p285 = pnand %p283, %p284
      %p286 = pneg %p285
      // Predicated region
      $region29: #{tpu_custom_call.1} parent=5 // pred_check
        _
      $region30: #{tpu_custom_call.1} parent=5 // pred_check_branch
        %288 = sbr.rel (%p285) target = $region32
      $region31: #{tpu_custom_call.1} parent=5 // pred_region
        %s289 = ssub.s32 %s24, 1
        %s290 = sand.u32 %s51, 1
        %s291 = scalar_lea.sflag [#allocation3], %s290
        %s292 = sand.u32 %s51, 1
        %s293 = smul.addr %s292, 8
        %s294 = scalar_lea.vmem [#allocation2], %s293
        // Predicated region
        $region33: #{tpu_custom_call.1} parent=31 // pred_check
          %p295 = pneg %p64
        $region34: #{tpu_custom_call.1} parent=31 // pred_check_branch
          %297 = sbr.rel (%p295) target = $region36
        $region35: #{tpu_custom_call.1} parent=31 // pred_region
          %299 = dma.done %s291, 128
        $region36: #{tpu_custom_call.1} parent=31 // pred_fallthru
          _
        %s300 = sand.u32 %s29, 1
        %s301 = scalar_lea.sflag [#allocation6], %s300
        %s302 = sand.u32 %s79, 1
        %s303 = smul.addr %s302, 8
        %s304 = scalar_lea.vmem [#allocation5], %s303
        // Predicated region
        $region37: #{tpu_custom_call.1} parent=31 // pred_check
          %p305 = pneg %p92
        $region38: #{tpu_custom_call.1} parent=31 // pred_check_branch
          %307 = sbr.rel (%p305) target = $region40
        $region39: #{tpu_custom_call.1} parent=31 // pred_region
          %309 = dma.done %s301, 128
        $region40: #{tpu_custom_call.1} parent=31 // pred_fallthru
          _
        %s310 = sand.u32 %s29, 1
        %s311 = scalar_lea.sflag [#allocation6], %s310
        %s312 = sand.u32 %s107, 1
        %s313 = smul.addr %s312, 2
        %s314 = scalar_lea.vmem [#allocation7], %s313
        // Predicated region
        $region41: #{tpu_custom_call.1} parent=31 // pred_check
          %p315 = pneg %p120
        $region42: #{tpu_custom_call.1} parent=31 // pred_check_branch
          %317 = sbr.rel (%p315) target = $region44
        $region43: #{tpu_custom_call.1} parent=31 // pred_region
          %319 = dma.done %s311, 32
        $region44: #{tpu_custom_call.1} parent=31 // pred_fallthru
          _
        %s320 = sand.u32 %s51, 1
        %s321 = scalar_lea.sflag [#allocation3], %s320
        %s322 = sand.u32 %s51, 1
        %s323 = smul.addr %s322, 8
        %s324 = scalar_lea.vmem [#allocation2], %s323
        %p325 = pneg %p64
        %p326 = pneg %p61
        %s327 = sand.u32 %s29, 1
        %s328 = scalar_lea.sflag [#allocation6], %s327
        %s329 = sand.u32 %s79, 1
        %s330 = smul.addr %s329, 8
        %s331 = scalar_lea.vmem [#allocation5], %s330
        %p332 = pneg %p92
        %p333 = pneg %p89
        %s334 = sand.u32 %s29, 1
        %s335 = scalar_lea.sflag [#allocation6], %s334
        %s336 = sand.u32 %s107, 1
        %s337 = smul.addr %s336, 2
        %s338 = scalar_lea.vmem [#allocation7], %s337
        %p339 = pneg %p120
        %p340 = pneg %p117
        %p341 = pneg %p146
        %p342 = pneg %p143
        %s343 = sand.u32 %s133, 1
        %s344 = scalar_lea.sflag [#allocation4], %s343
        %s345 = sand.u32 %s133, 1
        %s346 = scalar_lea.vmem [#allocation8], %s345
        %p347 = pneg %p172
        %p348 = pneg %p169
        %s349 = sand.u32 %s29, 1
        %s350 = scalar_lea.sflag [#allocation10], %s349
        %s351 = sand.u32 %s159, 1
        %s352 = scalar_lea.vmem [#allocation9], %s351
        %p353 = pneg %p198
        %p354 = pneg %p195
        %s355 = sand.u32 %s29, 1
        %s356 = scalar_lea.sflag [#allocation10], %s355
        %s357 = sand.u32 %s185, 1
        %s358 = scalar_lea.vmem [#allocation11], %s357
        %p359 = scmp.eq.s32.totalorder %s34, 0
        // Predicated region
        $region45: #{tpu_custom_call.1} parent=31 // pred_check
          %p360 = pneg %p359
        $region46: #{tpu_custom_call.1} parent=31 // pred_check_branch
          %362 = sbr.rel (%p360) target = $region48
        $region47: #{tpu_custom_call.1} parent=31 // pred_region
          %363 = vst [vmem:[%s346] sm:$0x1] 0.0
          %364 = vst [vmem:[%s352] sm:$0x1] 0.0
          %365 = vst [vmem:[%s358] sm:$0x1] 0.0
        $region48: #{tpu_custom_call.1} parent=31 // pred_fallthru
          _
        %v366 = vlaneseq
        %v367 = vshrl.u32 %v366, 7
        %v368 = vlaneseq
        %v369 = vand.u32 %v368, 127
        %s370 = smul.u32 %s34, 2
        %v371 = vstv %s370
        %v372 = vadd.s32 %v371, %v367
        %v373 = vmul.u32 %v372, 128
        %v374 = vadd.s32 %v373, %v369
        %vm375 = vcmp.lt.s32.totalorder %v374, 256
        %v376 = vld [vmem:[%s294] sm:$0x3]
        %v377 = vld [vmem:[%s294 + $0x2] sm:$0x3]
        %v378 = vld [vmem:[%s294 + $0x4] sm:$0x3]
        %v379 = vld [vmem:[%s294 + $0x6] sm:$0x3]
        %v380 = vld [vmem:[%s304] sm:$0x3]
        %v381 = vld [vmem:[%s304 + $0x2] sm:$0x3]
        %v382 = vld [vmem:[%s304 + $0x4] sm:$0x3]
        %v383 = vld [vmem:[%s304 + $0x6] sm:$0x3]
        %v384 = vmul.f32 %v376, %v380
        %v385 = vmul.f32 %v377, %v381
        %v386 = vmul.f32 %v378, %v382
        %v387 = vmul.f32 %v379, %v383
        %vm388 = vcmask 1041408
        %v389 = vsel %vm388, %v384, 0.0
        %v390 = vsel %vm388, %v385, 0.0
        %v391 = vadd.f32 %v389, %v390
        %v392 = vsel %vm388, %v386, 0.0
        %v393 = vadd.f32 %v391, %v392
        %v394 = vsel %vm388, %v387, 0.0
        %v395 = vadd.f32 %v393, %v394
        %v396 = vmul.f32 %v376, %v376
        %v397 = vmul.f32 %v377, %v377
        %v398 = vmul.f32 %v378, %v378
        %v399 = vmul.f32 %v379, %v379
        %v400 = vsel %vm388, %v396, 0.0
        %v401 = vsel %vm388, %v397, 0.0
        %v402 = vadd.f32 %v400, %v401
        %v403 = vsel %vm388, %v398, 0.0
        %v404 = vadd.f32 %v402, %v403
        %v405 = vsel %vm388, %v399, 0.0
        %v406 = vadd.f32 %v404, %v405
        %v407 = vmul.f32 %v380, %v380
        %v408 = vmul.f32 %v381, %v381
        %v409 = vmul.f32 %v382, %v382
        %v410 = vmul.f32 %v383, %v383
        %v411 = vsel %vm388, %v407, 0.0
        %v412 = vsel %vm388, %v408, 0.0
        %v413 = vadd.f32 %v411, %v412
        %v414 = vsel %vm388, %v409, 0.0
        %v415 = vadd.f32 %v413, %v414
        %v416 = vsel %vm388, %v410, 0.0
        %v417 = vadd.f32 %v415, %v416
        %v418 = vmax.f32 %v406, 1e-12
        %v419 = vrsqrt.pop %v418
        %v420 = vmul.f32 %v419, %v418
        %v421 = vmul.f32 %v420, %v419
        %v422 = vmul.f32 0.5, %v421
        %v423 = vsub.f32 1.5, %v422
        %v424 = vmul.f32 %v419, %v423
        %vm425 = vweird.f32 %v418
        %vm426 = vweird.f32 %v419
        %vm427 = vmor %vm425, %vm426
        %v428 = vsel %vm427, %v419, %v424
        %v429 = vmax.f32 %v417, 1e-12
        %v430 = vrsqrt.pop %v429
        %v431 = vmul.f32 %v430, %v429
        %v432 = vmul.f32 %v431, %v430
        %v433 = vmul.f32 0.5, %v432
        %v434 = vsub.f32 1.5, %v433
        %v435 = vmul.f32 %v430, %v434
        %vm436 = vweird.f32 %v429
        %vm437 = vweird.f32 %v430
        %vm438 = vmor %vm436, %vm437
        %v439 = vsel %vm438, %v430, %v435
        %v440 = vmul.f32 %v428, %v439
        %v441 = vmul.f32 %v395, %v440
        %v442 = vmax.f32 %v441, -0.9999999
        %v443 = vmin.f32 %v442, 0.9999999
        %v444 = vand.u32 2147483647, %v443
        %v445 = vmul.f32 %v444, -0.0012624911
        %v446 = vadd.f32 %v445, 0.00667009
        %v447 = vmul.f32 %v446, %v444
        %v448 = vadd.f32 %v447, -0.017088126
        %v449 = vmul.f32 %v448, %v444
        %v450 = vadd.f32 %v449, 0.03089188
        %v451 = vmul.f32 %v450, %v444
        %v452 = vadd.f32 %v451, -0.050174303
        %v453 = vmul.f32 %v452, %v444
        %v454 = vadd.f32 %v453, 0.08897899
        %v455 = vmul.f32 %v454, %v444
        %v456 = vadd.f32 %v455, -0.2145988
        %v457 = vmul.f32 %v456, %v444
        %v458 = vadd.f32 %v457, 1.5707963
        %v459 = vsub.f32 1.0, %v444
        %v460 = vrsqrt.pop %v459
        %v461 = vmul.f32 %v460, %v459
        %v462 = vmul.f32 %v461, %v460
        %v463 = vmul.f32 0.5, %v462
        %v464 = vsub.f32 1.5, %v463
        %v465 = vmul.f32 %v460, %v464
        %v466 = vmul.f32 %v459, %v465
        %vm467 = vcmp.eq.f32.partialorder %v459, inf
        %v468 = vsel %vm467, %v459, %v466
        %vm469 = vcmp.eq.f32.partialorder %v459, 0.0
        %v470 = vand.u32 %v459, 2147483648
        %v471 = vsel %vm469, %v470, %v468
        %v472 = vmul.f32 %v471, %v458
        %vm473 = vcmp.ge.f32.partialorder %v443, 0.0
        %v474 = vsub.f32 3.1415927, %v472
        %v475 = vsel %vm473, %v472, %v474
        %v476 = vsel %vm375, %v475, 0.0
        %v477 = vld [vmem:[%s314] sm:$0x3]
        %v478 = vsel %vm375, %v477, 0.0
        %v479 = vld [vmem:[%s346] sm:$0x1]
        %v480 = vsel %vm388, %v476, 0.0
        %v481 = vrot.slane %v480, 4
        %v482 = vadd.f32 %v480, %v481
        %v483 = vrot.slane %v482, 2
        %v484 = vadd.f32 %v482, %v483
        %v485 = vrot.slane %v484, 1
        %v486 = vadd.f32 %v484, %v485
        %v487 = vadd.f32 %v479, %v486
        %488 = vst [vmem:[%s346] sm:$0x1] %v487
        %v489 = vld [vmem:[%s352] sm:$0x1]
        %v490 = vmul.f32 %v476, %v478
        %v491 = vsel %vm388, %v490, 0.0
        %v492 = vrot.slane %v491, 4
        %v493 = vadd.f32 %v491, %v492
        %v494 = vrot.slane %v493, 2
        %v495 = vadd.f32 %v493, %v494
        %v496 = vrot.slane %v495, 1
        %v497 = vadd.f32 %v495, %v496
        %v498 = vadd.f32 %v489, %v497
        %499 = vst [vmem:[%s352] sm:$0x1] %v498
        %v500 = vld [vmem:[%s358] sm:$0x1]
        %v501 = vsel %vm388, %v478, 0.0
        %v502 = vrot.slane %v501, 4
        %v503 = vadd.f32 %v501, %v502
        %v504 = vrot.slane %v503, 2
        %v505 = vadd.f32 %v503, %v504
        %v506 = vrot.slane %v505, 1
        %v507 = vadd.f32 %v505, %v506
        %v508 = vadd.f32 %v500, %v507
        %509 = vst [vmem:[%s358] sm:$0x1] %v508
        %s510 = sand.u32 %s133, 1
        %s511 = scalar_lea.sflag [#allocation4], %s510
        %s512 = sand.u32 %s133, 1
        %s513 = scalar_lea.vmem [#allocation8], %s512
        %s514 = sand.u32 %s29, 1
        %s515 = scalar_lea.sflag [#allocation10], %s514
        %s516 = sand.u32 %s159, 1
        %s517 = scalar_lea.vmem [#allocation9], %s516
        %s518 = sand.u32 %s29, 1
        %s519 = scalar_lea.sflag [#allocation10], %s518
        %s520 = sand.u32 %s185, 1
        %s521 = scalar_lea.vmem [#allocation11], %s520
        // Predicated region
        $region49: #{tpu_custom_call.1} parent=31 // pred_check
          %p522 = pneg %p143
        $region50: #{tpu_custom_call.1} parent=31 // pred_check_branch
          %524 = sbr.rel (%p522) target = $region52
        $region51: #{tpu_custom_call.1} parent=31 // pred_region
          %526 = vsyncadd %s511, 0
          %s527 = scalar_lea.hbm %s3, %s33
          %s529 = sshll.u32 %s513, 4
          %s530 = int_to_ptr.vmem [resolvable:$true] %s529
          %s531 = sshll.u32 %s527, 4
          %s532 = int_to_ptr.hbm [resolvable:$true] %s531
          %534 = dma.vmem_to_hbm [thread:$0]  %s530, 16, %s532, %s511
        $region52: #{tpu_custom_call.1} parent=31 // pred_fallthru
          _
        // Predicated region
        $region53: #{tpu_custom_call.1} parent=31 // pred_check
          %p535 = pneg %p169
        $region54: #{tpu_custom_call.1} parent=31 // pred_check_branch
          %537 = sbr.rel (%p535) target = $region56
        $region55: #{tpu_custom_call.1} parent=31 // pred_region
          %539 = vsyncadd %s515, 0
          %s540 = scalar_lea.hbm %s4, %s33
          %s542 = sshll.u32 %s517, 4
          %s543 = int_to_ptr.vmem [resolvable:$true] %s542
          %s544 = sshll.u32 %s540, 4
          %s545 = int_to_ptr.hbm [resolvable:$true] %s544
          %547 = dma.vmem_to_hbm [thread:$0]  %s543, 16, %s545, %s515
        $region56: #{tpu_custom_call.1} parent=31 // pred_fallthru
          _
        // Predicated region
        $region57: #{tpu_custom_call.1} parent=31 // pred_check
          %p548 = pneg %p195
        $region58: #{tpu_custom_call.1} parent=31 // pred_check_branch
          %550 = sbr.rel (%p548) target = $region60
        $region59: #{tpu_custom_call.1} parent=31 // pred_region
          %552 = vsyncadd %s519, 0
          %s553 = scalar_lea.hbm %s5, %s33
          %s555 = sshll.u32 %s521, 4
          %s556 = int_to_ptr.vmem [resolvable:$true] %s555
          %s557 = sshll.u32 %s553, 4
          %s558 = int_to_ptr.hbm [resolvable:$true] %s557
          %560 = dma.vmem_to_hbm [thread:$0]  %s556, 16, %s558, %s519
        $region60: #{tpu_custom_call.1} parent=31 // pred_fallthru
          _
      $region32: #{tpu_custom_call.1} parent=5 // pred_fallthru
        _
      %p561 = scmp.le.s32.totalorder 2, %s24
      // Predicated region
      $region61: #{tpu_custom_call.1} parent=5 // pred_check
        %p562 = pneg %p561
      $region62: #{tpu_custom_call.1} parent=5 // pred_check_branch
        %564 = sbr.rel (%p562) target = $region64
      $region63: #{tpu_custom_call.1} parent=5 // pred_region
        %s565 = ssub.s32 %s24, 2
        // Predicated region
        $region65: #{tpu_custom_call.1} parent=63 // pred_check
          %p566 = pneg %p149
        $region66: #{tpu_custom_call.1} parent=63 // pred_check_branch
          %568 = sbr.rel (%p566) target = $region68
        $region67: #{tpu_custom_call.1} parent=63 // pred_region
          %s569 = sand.u32 %s134, 1
          %s570 = scalar_lea.sflag [#allocation4], %s569
          %s571 = sand.u32 %s134, 1
          %s572 = scalar_lea.vmem [#allocation8], %s571
          %574 = dma.done %s570, 16
        $region68: #{tpu_custom_call.1} parent=63 // pred_fallthru
          _
        // Predicated region
        $region69: #{tpu_custom_call.1} parent=63 // pred_check
          %p575 = pneg %p175
        $region70: #{tpu_custom_call.1} parent=63 // pred_check_branch
          %577 = sbr.rel (%p575) target = $region72
        $region71: #{tpu_custom_call.1} parent=63 // pred_region
          %s578 = sand.u32 %s30, 1
          %s579 = scalar_lea.sflag [#allocation10], %s578
          %s580 = sand.u32 %s160, 1
          %s581 = scalar_lea.vmem [#allocation9], %s580
          %583 = dma.done %s579, 16
        $region72: #{tpu_custom_call.1} parent=63 // pred_fallthru
          _
        // Predicated region
        $region73: #{tpu_custom_call.1} parent=63 // pred_check
          %p584 = pneg %p201
        $region74: #{tpu_custom_call.1} parent=63 // pred_check_branch
          %586 = sbr.rel (%p584) target = $region76
        $region75: #{tpu_custom_call.1} parent=63 // pred_region
          %s587 = sand.u32 %s30, 1
          %s588 = scalar_lea.sflag [#allocation10], %s587
          %s589 = sand.u32 %s186, 1
          %s590 = scalar_lea.vmem [#allocation11], %s589
          %592 = dma.done %s588, 16
        $region76: #{tpu_custom_call.1} parent=63 // pred_fallthru
          _
      $region64: #{tpu_custom_call.1} parent=5 // pred_fallthru
        _
    $region6: #{tpu_custom_call.1} parent=1 // loop_footer
      %s28 = sadd.s32 1, %s24
    $region7: #{tpu_custom_call.1} parent=1 // loop_footer_branch
      %23 = sbr.rel target = $region3
    $region8: #{tpu_custom_call.1} parent=1 // loop_exit
      _
    %593 = vsyncpa [#allocation3], 1
    %s594 = scalar_lea.sflag [#allocation3], 1
    %595 = vsyncpa %s594, 1
    %596 = vsyncpa [#allocation6], 1
    %s597 = scalar_lea.sflag [#allocation6], 1
    %598 = vsyncpa %s597, 1
    %599 = vsyncpa [#allocation4], 1
    %s600 = scalar_lea.sflag [#allocation4], 1
    %601 = vsyncpa %s600, 1
    %602 = vsyncpa [#allocation10], 1
    %s603 = scalar_lea.sflag [#allocation10], 1
    %604 = vsyncpa %s603, 1

</llo_original>
